<compile_context>
chip_gen: v6e
topology: v6e:2x2x1
jax: 0.10.0
libtpu: 0.0.40
codegen_flags: <defaults>
</compile_context>

<pallas_src>
import functools
import math

import jax
import jax.numpy as jnp
from jax.experimental import pallas as pl
from jax.experimental.pallas import tpu as pltpu


# ----------------------------------------------------------------------------
# Kernel: per-(batch, class) partial sums of inter and (sum_p + count)
# ----------------------------------------------------------------------------
def _soft_iou_kernel(logits_ref, target_ref, inter_ref, upc_ref, *,
                     nclass, binary, n_splits, tiles_per_split, n_tiles,
                     valid_last, need_tail_mask, need_step_guard):
    li = pl.program_id(1)
    if n_splits > 1:
        tile = (pl.program_id(0) % n_splits) * tiles_per_split + li
    else:
        tile = li

    # Zero the resident accumulator blocks at the first tile of this grid row.
    @pl.when(li == 0)
    def _():
        inter_ref[...] = jnp.zeros_like(inter_ref)
        upc_ref[...] = jnp.zeros_like(upc_ref)

    def accumulate(x, t):
        # x: (C_in, rows, 128) float32 (already sanitised on the last tile)
        # t: (rows, 128) int32
        if binary:
            p1 = 1.0 / (1.0 + jnp.exp(-x[0]))          # sigmoid
            probs = (1.0 - p1, p1)                      # class 0, class 1
            parts_i, parts_u = [], []
            for ci in range(2):
                oh = (t == ci).astype(jnp.float32)
                parts_i.append(jnp.sum(probs[ci] * oh, axis=0, keepdims=True))
                parts_u.append(jnp.sum(probs[ci], axis=0, keepdims=True)
                               + jnp.sum(oh, axis=0, keepdims=True))
            inter_part = jnp.concatenate(parts_i, axis=0)      # (2, 128)
            upc_part = jnp.concatenate(parts_u, axis=0)        # (2, 128)
        else:
            m = jnp.max(x, axis=0, keepdims=True)               # elementwise across class slabs
            e = jnp.exp(x - m)
            inv = 1.0 / jnp.sum(e, axis=0, keepdims=True)       # one divide per lane, not per class
            p = e * inv                                          # (C, rows, 128)
            cls = jax.lax.broadcasted_iota(jnp.int32, p.shape, 0)
            oh = (cls == t[None]).astype(jnp.float32)            # (C, rows, 128)
            inter_part = jnp.sum(p * oh, axis=1)                 # (C, 128)
            upc_part = jnp.sum(p, axis=1) + jnp.sum(oh, axis=1)  # (C, 128)
        inter_ref[...] += inter_part[None]
        upc_ref[...] += upc_part[None]

    if need_tail_mask:
        # Full tiles: no masking work at all.
        if n_tiles > 1:
            @pl.when(tile < n_tiles - 1)
            def _():
                accumulate(logits_ref[0].astype(jnp.float32), target_ref[0])

        # Last (ragged) tile: sanitise the out-of-bounds tail BEFORE exp.
        # Padded lanes get p ~= one_hot(class 0) and an out-of-range target, so
        # only class 0's sum(p) picks up exactly +1 per padded lane (corrected
        # in the epilogue); inter and count pick up nothing.
        @pl.when(tile == n_tiles - 1)
        def _():
            x = logits_ref[0].astype(jnp.float32)
            t = target_ref[0]
            pos = (jax.lax.broadcasted_iota(jnp.int32, t.shape, 0) * 128
                   + jax.lax.broadcasted_iota(jnp.int32, t.shape, 1))
            valid = pos < valid_last
            if binary:
                fill = jnp.full(x.shape, -40.0, jnp.float32)      # sigmoid -> 0, class0 prob -> 1
            else:
                cls = jax.lax.broadcasted_iota(jnp.int32, x.shape, 0)
                fill = jnp.where(cls == 0, 40.0, -40.0)           # softmax -> one_hot(0)
            x = jnp.where(valid[None], x, fill)
            t = jnp.where(valid, t, -1)                            # never matches any class
            accumulate(x, t)
    elif need_step_guard:
        @pl.when(tile < n_tiles)
        def _():
            accumulate(logits_ref[0].astype(jnp.float32), target_ref[0])
    else:
        accumulate(logits_ref[0].astype(jnp.float32), target_ref[0])


def _choose_tile_rows(r_total, c_in, logit_itemsize,
                      target_step_bytes=2 * 1024 * 1024,
                      vmem_input_budget=12 * 1024 * 1024):
    """Rows of 128 lanes per grid step: ~2 MiB moved/step, double-buffered inputs <= ~12 MiB."""
    bytes_per_row = 128 * (c_in * logit_itemsize + 4)   # logits + int32 target
    rows = max(8, target_step_bytes // bytes_per_row)
    rows = min(rows, max(8, vmem_input_budget // (2 * bytes_per_row)))
    if rows >= r_total:
        return r_total                                   # full dim: any size allowed
    if rows >= 32:
        rows = (rows // 32) * 32                         # keeps bf16/int8 sublane tiling happy
    else:
        rows = max(8, (rows // 8) * 8)
    return min(rows, r_total)


# ----------------------------------------------------------------------------
# Wrapper
# ----------------------------------------------------------------------------
def soft_iou_loss(logits, target, smooth=1e-5, tile_rows=None, spatial_splits=None):
    """Forward pass of SoftIoULoss (mask=None).

    logits: (N, C, *spatial); target: (N, 1, *spatial) or (N, *spatial) class ids.
    """
    n, c_in = logits.shape[0], logits.shape[1]
    l = math.prod(logits.shape[2:])
    binary = (c_in == 1)
    nclass = 2 if binary else c_in

    lg = logits.reshape(n, c_in, l)
    if not jnp.issubdtype(lg.dtype, jnp.floating):
        lg = lg.astype(jnp.float32)
    tg = target.reshape(n, l)
    if tg.dtype != jnp.int32:
        tg = tg.astype(jnp.int32)

    # Pad only to a multiple of 128 so the lane-dense (rows, 128) view is a free
    # reshape (big volumes are usually already aligned; pad values are masked).
    l128 = 128 * pl.cdiv(l, 128)
    if l128 != l:
        lg = jnp.pad(lg, ((0, 0), (0, 0), (0, l128 - l)))
        tg = jnp.pad(tg, ((0, 0), (0, l128 - l)))
    r = l128 // 128
    lg = lg.reshape(n, c_in, r, 128)
    tg = tg.reshape(n, r, 128)

    if tile_rows is None:
        tile_rows = _choose_tile_rows(r, c_in, lg.dtype.itemsize)
    else:
        tile_rows = min(int(tile_rows), r)
        if tile_rows < r:
            tile_rows = max(8, (tile_rows // 8) * 8)

    n_tiles = pl.cdiv(r, tile_rows)
    if spatial_splits is None:
        spatial_splits = 2 if n == 1 else 1              # v7x megacore: keep both TCs busy at N==1
    n_splits = max(1, min(int(spatial_splits), n_tiles))
    tiles_per_split = pl.cdiv(n_tiles, n_splits)
    need_step_guard = (n_splits * tiles_per_split != n_tiles)

    valid_last = l - (n_tiles - 1) * tile_rows * 128     # valid lanes in the last tile
    total_pad = n_tiles * tile_rows * 128 - l            # lanes that must not contribute
    need_tail_mask = total_pad > 0

    def _row_block(g, li):
        rb = (g % n_splits) * tiles_per_split + li if n_splits > 1 else li
        if need_step_guard:
            rb = jnp.minimum(rb, n_tiles - 1)
        return rb

    def _batch(g):
        return g // n_splits if n_splits > 1 else g

    kernel = functools.partial(
        _soft_iou_kernel, nclass=nclass, binary=binary,
        n_splits=n_splits, tiles_per_split=tiles_per_split, n_tiles=n_tiles,
        valid_last=valid_last, need_tail_mask=need_tail_mask,
        need_step_guard=need_step_guard)

    inter_p, upc_p = pl.pallas_call(
        kernel,
        out_shape=(
            jax.ShapeDtypeStruct((n * n_splits, nclass, 128), jnp.float32),
            jax.ShapeDtypeStruct((n * n_splits, nclass, 128), jnp.float32),
        ),
        grid_spec=pltpu.PrefetchScalarGridSpec(
            num_scalar_prefetch=0,
            grid=(n * n_splits, tiles_per_split),
            in_specs=[
                pl.BlockSpec((1, c_in, tile_rows, 128),
                             lambda g, li: (_batch(g), 0, _row_block(g, li), 0)),
                pl.BlockSpec((1, tile_rows, 128),
                             lambda g, li: (_batch(g), _row_block(g, li), 0)),
            ],
            out_specs=[
                pl.BlockSpec((1, nclass, 128), lambda g, li: (g, 0, 0)),
                pl.BlockSpec((1, nclass, 128), lambda g, li: (g, 0, 0)),
            ],
        ),
        compiler_params=pltpu.CompilerParams(
            dimension_semantics=("parallel", "arbitrary"),
            vmem_limit_bytes=32 * 1024 * 1024,
        ),
    )(lg, tg)

    # Tiny O(N * nclass * 128) epilogue in plain JAX.
    inter = inter_p.reshape(n, n_splits, nclass, 128).sum(axis=(1, 3))
    upc = upc_p.reshape(n, n_splits, nclass, 128).sum(axis=(1, 3))
    union = upc - inter
    if total_pad:
        union = union.at[:, 0].add(-float(total_pad))    # remove exact class-0 pad contribution
    dice = (inter + smooth) / (union + smooth)
    return 1.0 - jnp.mean(dice)


# ----------------------------------------------------------------------------
# Pure-JAX reference (mirrors the PyTorch code exactly) for verification
# ----------------------------------------------------------------------------
def _soft_iou_ref(logits, target, smooth=1e-5):
    n, c = logits.shape[0], logits.shape[1]
    l = math.prod(logits.shape[2:])
    lg = logits.reshape(n, c, l).astype(jnp.float32)
    tg = target.reshape(n, 1, l).astype(jnp.int32)

    if c > 1:
        pred = jax.nn.softmax(lg, axis=1)
        nclass = c
    else:
        p = jax.nn.sigmoid(lg)
        pred = jnp.concatenate([1.0 - p, p], axis=1)
        nclass = 2

    onehot = jax.nn.one_hot(tg[:, 0, :], nclass, axis=1, dtype=jnp.float32)
    inter = pred * onehot
    union = pred + onehot - inter
    inter = inter.sum(axis=2)
    union = union.sum(axis=2)
    dice = (inter + smooth) / (union + smooth)
    return 1.0 - jnp.mean(dice)


if __name__ == "__main__":
    key = jax.random.PRNGKey(0)
    k1, k2, k3, k4, k5, k6 = jax.random.split(key, 6)

    # 1) Multi-class 3-D volume, 128-aligned spatial size: (N,C,D,H,W)=(2,4,16,16,16).
    logits = jax.random.normal(k1, (2, 4, 16, 16, 16), dtype=jnp.float32)
    target = jax.random.randint(k2, (2, 1, 16, 16, 16), 0, 4, dtype=jnp.int32)
    out = jax.block_until_ready(soft_iou_loss(logits, target))
    ref = jax.block_until_ready(_soft_iou_ref(logits, target))
    assert jnp.allclose(out, ref, rtol=1e-5, atol=1e-5), (out, ref)

    # 2) Binary (sigmoid) 2-D case, bf16 logits fed straight to the kernel,
    #    ragged spatial length (10*13 = 130, not a multiple of 128).
    logits1 = jax.random.normal(k3, (2, 1, 10, 13), dtype=jnp.bfloat16)
    target1 = jax.random.randint(k4, (2, 1, 10, 13), 0, 2, dtype=jnp.int32)
    out1 = jax.block_until_ready(soft_iou_loss(logits1, target1))
    ref1 = jax.block_until_ready(_soft_iou_ref(logits1, target1))
    assert jnp.allclose(out1, ref1, rtol=1e-5, atol=1e-5), (out1, ref1)

    # 3) Batch of 1: exercises the spatial split (both TensorCores on v7x) plus
    #    an uneven tile count and ragged tail (small tile_rows forced for coverage).
    logits2 = jax.random.normal(k5, (1, 5, 2688), dtype=jnp.float32)
    target2 = jax.random.randint(k6, (1, 1, 2688), 0, 5, dtype=jnp.int32)
    out2 = jax.block_until_ready(soft_iou_loss(logits2, target2, tile_rows=8))
    ref2 = jax.block_until_ready(_soft_iou_ref(logits2, target2))
    assert jnp.allclose(out2, ref2, rtol=1e-5, atol=1e-5), (out2, ref2)

    print("KERNEL_OK")
</pallas_src>

<mosaic_0001>
module attributes {stable_mosaic.version = 11 : i64} {
  func.func @_soft_iou_kernel(%arg0: i32, %arg1: i32, %arg2: memref<1x4x32x128xf32, #tpu.memory_space<vmem>>, %arg3: memref<1x32x128xi32, #tpu.memory_space<vmem>>, %arg4: memref<1x4x128xf32, #tpu.memory_space<vmem>>, %arg5: memref<1x4x128xf32, #tpu.memory_space<vmem>>) attributes {dimension_semantics = [#tpu.dimension_semantics<parallel>, #tpu.dimension_semantics<arbitrary>], iteration_bounds = array<i64: 2, 1>, scalar_prefetch = 0 : i64, scratch_operands = 0 : i64, tpu.core_type = #tpu.core_type<tc>, window_params = [{transform_indices = @transform_0, window_bounds = array<i64: 1, 4, 32, 128>}, {transform_indices = @transform_1, window_bounds = array<i64: 1, 32, 128>}, {transform_indices = @transform_2, window_bounds = array<i64: 1, 4, 128>}, {transform_indices = @transform_3, window_bounds = array<i64: 1, 4, 128>}]} {
    %c0_i32 = arith.constant 0 : i32
    %0 = arith.cmpi eq, %arg1, %c0_i32 : i32
    %1 = arith.extui %0 : i1 to i32
    %c0_i32_0 = arith.constant 0 : i32
    %2 = arith.cmpi ne, %1, %c0_i32_0 : i32
    scf.if %2 {
      %cst_24 = arith.constant 0.000000e+00 : f32
      %37 = vector.broadcast %cst_24 : f32 to vector<1x4x128xf32>
      %c0_25 = arith.constant 0 : index
      %c0_26 = arith.constant 0 : index
      %c0_27 = arith.constant 0 : index
      %38 = vector.load %arg4[%c0_25, %c0_26, %c0_27] : memref<1x4x128xf32, #tpu.memory_space<vmem>>, vector<1x4x128xf32>
      tpu.vector_store %arg4[%c0_25, %c0_26, %c0_27], %37 {strides = array<i32>} : memref<1x4x128xf32, #tpu.memory_space<vmem>>, vector<1x4x128xf32>,
      %cst_28 = arith.constant 0.000000e+00 : f32
      %39 = vector.broadcast %cst_28 : f32 to vector<1x4x128xf32>
      %c0_29 = arith.constant 0 : index
      %c0_30 = arith.constant 0 : index
      %c0_31 = arith.constant 0 : index
      %40 = vector.load %arg5[%c0_29, %c0_30, %c0_31] : memref<1x4x128xf32, #tpu.memory_space<vmem>>, vector<1x4x128xf32>
      tpu.vector_store %arg5[%c0_29, %c0_30, %c0_31], %39 {strides = array<i32>} : memref<1x4x128xf32, #tpu.memory_space<vmem>>, vector<1x4x128xf32>,
    } else {
    }
    %c0 = arith.constant 0 : index
    %c0_1 = arith.constant 0 : index
    %c0_2 = arith.constant 0 : index
    %c0_3 = arith.constant 0 : index
    %3 = vector.load %arg2[%c0, %c0_1, %c0_2, %c0_3] : memref<1x4x32x128xf32, #tpu.memory_space<vmem>>, vector<1x4x32x128xf32>
    %4 = vector.shape_cast %3 : vector<1x4x32x128xf32> to vector<4x32x128xf32>
    %c0_4 = arith.constant 0 : index
    %c0_5 = arith.constant 0 : index
    %c0_6 = arith.constant 0 : index
    %5 = vector.load %arg3[%c0_4, %c0_5, %c0_6] : memref<1x32x128xi32, #tpu.memory_space<vmem>>, vector<1x32x128xi32>
    %6 = vector.shape_cast %5 : vector<1x32x128xi32> to vector<32x128xi32>
    %cst = arith.constant dense<0xFF800000> : vector<32x128xf32>
    %7 = vector.multi_reduction <maximumf>, %4, %cst [0] : vector<4x32x128xf32> to vector<32x128xf32>
    %8 = vector.shape_cast %7 : vector<32x128xf32> to vector<1x32x128xf32>
    %9 = vector.broadcast %8 : vector<1x32x128xf32> to vector<4x32x128xf32>
    %10 = arith.subf %4, %9 : vector<4x32x128xf32>
    %11 = math.exp %10 : vector<4x32x128xf32>
    %cst_7 = arith.constant dense<0.000000e+00> : vector<32x128xf32>
    %12 = vector.multi_reduction <add>, %11, %cst_7 [0] : vector<4x32x128xf32> to vector<32x128xf32>
    %13 = vector.shape_cast %12 : vector<32x128xf32> to vector<1x32x128xf32>
    %cst_8 = arith.constant 1.000000e+00 : f32
    %14 = vector.broadcast %cst_8 : f32 to vector<1x32x128xf32>
    %15 = arith.divf %14, %13 : vector<1x32x128xf32>
    %16 = vector.broadcast %15 : vector<1x32x128xf32> to vector<4x32x128xf32>
    %17 = arith.mulf %11, %16 : vector<4x32x128xf32>
    %18 = tpu.iota {dimensions = array<i32: 0>} : vector<4x32x128xi32>
    %19 = vector.shape_cast %6 : vector<32x128xi32> to vector<1x32x128xi32>
    %20 = vector.broadcast %19 : vector<1x32x128xi32> to vector<4x32x128xi32>
    %21 = arith.cmpi eq, %18, %20 : vector<4x32x128xi32>
    %22 = arith.extui %21 : vector<4x32x128xi1> to vector<4x32x128xi32>
    %23 = arith.sitofp %22 : vector<4x32x128xi32> to vector<4x32x128xf32>
    %24 = arith.mulf %17, %23 : vector<4x32x128xf32>
    %cst_9 = arith.constant dense<0.000000e+00> : vector<4x128xf32>
    %25 = vector.multi_reduction <add>, %24, %cst_9 [1] : vector<4x32x128xf32> to vector<4x128xf32>
    %cst_10 = arith.constant dense<0.000000e+00> : vector<4x128xf32>
    %26 = vector.multi_reduction <add>, %17, %cst_10 [1] : vector<4x32x128xf32> to vector<4x128xf32>
    %cst_11 = arith.constant dense<0.000000e+00> : vector<4x128xf32>
    %27 = vector.multi_reduction <add>, %23, %cst_11 [1] : vector<4x32x128xf32> to vector<4x128xf32>
    %28 = arith.addf %26, %27 : vector<4x128xf32>
    %c0_12 = arith.constant 0 : index
    %c0_13 = arith.constant 0 : index
    %c0_14 = arith.constant 0 : index
    %29 = vector.load %arg4[%c0_12, %c0_13, %c0_14] : memref<1x4x128xf32, #tpu.memory_space<vmem>>, vector<1x4x128xf32>
    %30 = vector.shape_cast %25 : vector<4x128xf32> to vector<1x4x128xf32>
    %31 = arith.addf %29, %30 : vector<1x4x128xf32>
    %c0_15 = arith.constant 0 : index
    %c0_16 = arith.constant 0 : index
    %c0_17 = arith.constant 0 : index
    %32 = vector.load %arg4[%c0_15, %c0_16, %c0_17] : memref<1x4x128xf32, #tpu.memory_space<vmem>>, vector<1x4x128xf32>
    tpu.vector_store %arg4[%c0_15, %c0_16, %c0_17], %31 {strides = array<i32>} : memref<1x4x128xf32, #tpu.memory_space<vmem>>, vector<1x4x128xf32>,
    %c0_18 = arith.constant 0 : index
    %c0_19 = arith.constant 0 : index
    %c0_20 = arith.constant 0 : index
    %33 = vector.load %arg5[%c0_18, %c0_19, %c0_20] : memref<1x4x128xf32, #tpu.memory_space<vmem>>, vector<1x4x128xf32>
    %34 = vector.shape_cast %28 : vector<4x128xf32> to vector<1x4x128xf32>
    %35 = arith.addf %33, %34 : vector<1x4x128xf32>
    %c0_21 = arith.constant 0 : index
    %c0_22 = arith.constant 0 : index
    %c0_23 = arith.constant 0 : index
    %36 = vector.load %arg5[%c0_21, %c0_22, %c0_23] : memref<1x4x128xf32, #tpu.memory_space<vmem>>, vector<1x4x128xf32>
    tpu.vector_store %arg5[%c0_21, %c0_22, %c0_23], %35 {strides = array<i32>} : memref<1x4x128xf32, #tpu.memory_space<vmem>>, vector<1x4x128xf32>,
    return
  }
  func.func @transform_0(%arg0: i32, %arg1: i32) -> (i32, i32, i32, i32) {
    %c0_i32 = arith.constant 0 : i32
    %c0_i32_0 = arith.constant 0 : i32
    %c0_i32_1 = arith.constant 0 : i32
    return %arg0, %c0_i32, %arg1, %c0_i32_0 : i32, i32, i32, i32
  }
  func.func @transform_1(%arg0: i32, %arg1: i32) -> (i32, i32, i32) {
    %c0_i32 = arith.constant 0 : i32
    %c0_i32_0 = arith.constant 0 : i32
    return %arg0, %arg1, %c0_i32 : i32, i32, i32
  }
  func.func @transform_2(%arg0: i32, %arg1: i32) -> (i32, i32, i32) {
    %c0_i32 = arith.constant 0 : i32
    %c0_i32_0 = arith.constant 0 : i32
    %c0_i32_1 = arith.constant 0 : i32
    return %arg0, %c0_i32, %c0_i32_0 : i32, i32, i32
  }
  func.func @transform_3(%arg0: i32, %arg1: i32) -> (i32, i32, i32) {
    %c0_i32 = arith.constant 0 : i32
    %c0_i32_0 = arith.constant 0 : i32
    %c0_i32_1 = arith.constant 0 : i32
    return %arg0, %c0_i32, %c0_i32_0 : i32, i32, i32
  }
}

</mosaic_0001>

<llo_original>
// kernel: tpu_custom_call.1
$region0: #{tpu_custom_call.1}
  #allocation0 [shape = 'u32[]', space=smem, size = 0x4, offset = 0x4, fixed_abs, tag = 'smem constant byte address 0x4 - core index']
  #allocation1 [shape = 'u32[144,128]{1,0:T(1,128)}', space=vmem, size = 0x12000, scoped, tag = 'internal scratch']
  %s0 = inlined_call_operand.hbm [shape: f32[2,4,32,128], index: 0, kind: input, shape index: {}]
  %s1 = inlined_call_operand.hbm [shape: s32[2,32,128], index: 1, kind: input, shape index: {}]
  %s2 = inlined_call_operand.hbm [shape: f32[2,4,128], index: 2, kind: output, shape index: {0}]
  %s3 = inlined_call_operand.hbm [shape: f32[2,4,128], index: 3, kind: output, shape index: {1}]
  %4 = xla_tuple %s2, %s3
  %s5 = sld [smem:[#allocation0]]
  $region61: #{tpu_custom_call.1} parent=0
    _
  %s7 = ssub.s32 1, %s5
  %s8 = scalar_select 0, %s7, %s5
  $region1: #{tpu_custom_call.1} parent=0
    #allocation2 [shape = 'u8[131072]{0}', space=vmem, size = 0x20000, scoped, tag = 'input window, operand 0']
    #allocation3 [shape = 's32[2]{0}', space=sflag, size = 0x8, scoped, tag = 'scoped memory for tpu_custom_call.1']
    #allocation4 [shape = 's32[2]{0}', space=sflag, size = 0x8, scoped, tag = 'scoped memory for tpu_custom_call.1']
    #allocation5 [shape = 'u8[32768]{0}', space=vmem, size = 0x8000, scoped, tag = 'input window, operand 1']
    #allocation6 [shape = 's32[2]{0}', space=sflag, size = 0x8, scoped, tag = 'scoped memory for tpu_custom_call.1']
    #allocation7 [shape = 'u8[4096]{0}', space=vmem, size = 0x1000, scoped, tag = 'output window, operand 0']
    #allocation8 [shape = 'u8[4096]{0}', space=vmem, size = 0x1000, scoped, tag = 'output window, operand 1']
    #allocation9 [shape = 's32[2]{0}', space=sflag, size = 0x8, scoped, tag = 'scoped memory for tpu_custom_call.1']
    %9 = vsyncpa [#allocation3], 0
    %s10 = scalar_lea.sflag [#allocation3], 1
    %11 = vsyncpa %s10, 0
    %12 = vsyncpa [#allocation6], 0
    %s13 = scalar_lea.sflag [#allocation6], 1
    %14 = vsyncpa %s13, 0
    %15 = vsyncpa [#allocation4], 0
    %s16 = scalar_lea.sflag [#allocation4], 1
    %17 = vsyncpa %s16, 0
    %18 = vsyncpa [#allocation9], 0
    %s19 = scalar_lea.sflag [#allocation9], 1
    %20 = vsyncpa %s19, 0
    loop: start=0, step=1, limit=4
    $region2: #{tpu_custom_call.1} parent=1 // loop_pre_header
      _
    $region3: #{tpu_custom_call.1} parent=1 // loop_header
      %s22 = sphi 0, %s26
      %p23 = scmp.ge.s32.totalorder %s22, 4
      %s29 = sphi 0, %s41
      %s30 = sphi 0, %s37
      %s31 = sphi 0, %s29
      %s32 = sphi 0, %s30
      %s33 = sphi 0, %s31
      %s34 = sphi 0, %s32
      %s46 = sphi 0, %s48
      %s49 = sphi 0, %s46
      %s50 = sphi 0, %s49
      %s66 = sphi 0, %s50
      %s74 = sphi 0, %s76
      %s77 = sphi 0, %s74
      %s78 = sphi 0, %s77
      %s94 = sphi 0, %s78
      %s100 = sphi 0, %s102
      %s103 = sphi 0, %s100
      %s104 = sphi 0, %s103
      %s120 = sphi 0, %s104
      %s126 = sphi 0, %s128
      %s129 = sphi 0, %s126
      %s130 = sphi 0, %s129
      %s146 = sphi 0, %s130
    $region4: #{tpu_custom_call.1} parent=1 // loop_header_branch
      %25 = sbr.rel (%p23) target = $region8
    $region5: #{tpu_custom_call.1} parent=1 // loop_body
      %s27 = ssub.s32 %s22, 1
      %s28 = ssub.s32 %s22, 2
      %s35 = sadd.s32 1, %s30
      %p36 = scmp.ge.s32.totalorder %s35, 1
      %s37 = scalar_select %p36, 0, %s35
      %s38 = sadd.s32 1, %s29
      %s39 = scalar_select %p36, %s38, %s29
      %p40 = scmp.ge.s32.totalorder %s39, 2
      %s41 = scalar_select %p40, 0, %s39
      %s42 = ssub.s32 %s29, %s41
      %s43 = ssub.s32 %s30, %s37
      %s44 = sor.u32 %s42, %s43
      %p45 = scmp.eq.s32.totalorder %s44, 0
      %s47 = sadd.s32 %s46, 1
      %s48 = scalar_select %p45, %s46, %s47
      %p51 = pneg %p45
      %p52 = scmp.eq.s32.totalorder %s22, 1
      %p53 = por %p51, %p52
      %p54 = scmp.ne.s32.totalorder %s46, %s49
      %p55 = scmp.eq.s32.totalorder %s22, 0
      %p56 = por %p54, %p55
      %p57 = scmp.ne.s32.totalorder %s46, %s49
      %p58 = scmp.eq.s32.totalorder %s27, 1
      %p59 = por %p57, %p58
      %p60 = scmp.ne.s32.totalorder %s49, %s50
      %p61 = scmp.eq.s32.totalorder %s27, 0
      %p62 = por %p60, %p61
      %p63 = scmp.ne.s32.totalorder %s49, %s50
      %p64 = scmp.eq.s32.totalorder %s28, 1
      %p65 = por %p63, %p64
      %p67 = scmp.ne.s32.totalorder %s50, %s66
      %p68 = scmp.eq.s32.totalorder %s28, 0
      %p69 = por %p67, %p68
      %s70 = ssub.s32 %s29, %s41
      %s71 = ssub.s32 %s30, %s37
      %s72 = sor.u32 %s70, %s71
      %p73 = scmp.eq.s32.totalorder %s72, 0
      %s75 = sadd.s32 %s74, 1
      %s76 = scalar_select %p73, %s74, %s75
      %p79 = pneg %p73
      %p80 = scmp.eq.s32.totalorder %s22, 1
      %p81 = por %p79, %p80
      %p82 = scmp.ne.s32.totalorder %s74, %s77
      %p83 = scmp.eq.s32.totalorder %s22, 0
      %p84 = por %p82, %p83
      %p85 = scmp.ne.s32.totalorder %s74, %s77
      %p86 = scmp.eq.s32.totalorder %s27, 1
      %p87 = por %p85, %p86
      %p88 = scmp.ne.s32.totalorder %s77, %s78
      %p89 = scmp.eq.s32.totalorder %s27, 0
      %p90 = por %p88, %p89
      %p91 = scmp.ne.s32.totalorder %s77, %s78
      %p92 = scmp.eq.s32.totalorder %s28, 1
      %p93 = por %p91, %p92
      %p95 = scmp.ne.s32.totalorder %s78, %s94
      %p96 = scmp.eq.s32.totalorder %s28, 0
      %p97 = por %p95, %p96
      %s98 = ssub.s32 %s29, %s41
      %p99 = scmp.eq.s32.totalorder %s98, 0
      %s101 = sadd.s32 %s100, 1
      %s102 = scalar_select %p99, %s100, %s101
      %p105 = pneg %p99
      %p106 = scmp.eq.s32.totalorder %s22, 1
      %p107 = por %p105, %p106
      %p108 = scmp.ne.s32.totalorder %s100, %s103
      %p109 = scmp.eq.s32.totalorder %s22, 0
      %p110 = por %p108, %p109
      %p111 = scmp.ne.s32.totalorder %s100, %s103
      %p112 = scmp.eq.s32.totalorder %s27, 1
      %p113 = por %p111, %p112
      %p114 = scmp.ne.s32.totalorder %s103, %s104
      %p115 = scmp.eq.s32.totalorder %s27, 0
      %p116 = por %p114, %p115
      %p117 = scmp.ne.s32.totalorder %s103, %s104
      %p118 = scmp.eq.s32.totalorder %s28, 1
      %p119 = por %p117, %p118
      %p121 = scmp.ne.s32.totalorder %s104, %s120
      %p122 = scmp.eq.s32.totalorder %s28, 0
      %p123 = por %p121, %p122
      %s124 = ssub.s32 %s29, %s41
      %p125 = scmp.eq.s32.totalorder %s124, 0
      %s127 = sadd.s32 %s126, 1
      %s128 = scalar_select %p125, %s126, %s127
      %p131 = pneg %p125
      %p132 = scmp.eq.s32.totalorder %s22, 1
      %p133 = por %p131, %p132
      %p134 = scmp.ne.s32.totalorder %s126, %s129
      %p135 = scmp.eq.s32.totalorder %s22, 0
      %p136 = por %p134, %p135
      %p137 = scmp.ne.s32.totalorder %s126, %s129
      %p138 = scmp.eq.s32.totalorder %s27, 1
      %p139 = por %p137, %p138
      %p140 = scmp.ne.s32.totalorder %s129, %s130
      %p141 = scmp.eq.s32.totalorder %s27, 0
      %p142 = por %p140, %p141
      %p143 = scmp.ne.s32.totalorder %s129, %s130
      %p144 = scmp.eq.s32.totalorder %s28, 1
      %p145 = por %p143, %p144
      %p147 = scmp.ne.s32.totalorder %s130, %s146
      %p148 = scmp.eq.s32.totalorder %s28, 0
      %p149 = por %p147, %p148
      %p150 = scmp.le.s32.totalorder 1, %s22
      %p151 = scmp.lt.s32.totalorder %s22, 3
      %p152 = pnand %p150, %p151
      %p153 = pneg %p152
      // Predicated region
      $region9: #{tpu_custom_call.1} parent=5 // pred_check
        _
      $region10: #{tpu_custom_call.1} parent=5 // pred_check_branch
        %155 = sbr.rel (%p152) target = $region12
      $region11: #{tpu_custom_call.1} parent=5 // pred_region
        %s156 = ssub.s32 %s22, 1
      $region12: #{tpu_custom_call.1} parent=5 // pred_fallthru
        _
      %p157 = scmp.lt.s32.totalorder %s22, 2
      // Predicated region
      $region13: #{tpu_custom_call.1} parent=5 // pred_check
        %p158 = pneg %p157
      $region14: #{tpu_custom_call.1} parent=5 // pred_check_branch
        %160 = sbr.rel (%p158) target = $region16
      $region15: #{tpu_custom_call.1} parent=5 // pred_region
        // Predicated region
        $region17: #{tpu_custom_call.1} parent=15 // pred_check
          %p161 = pneg %p56
        $region18: #{tpu_custom_call.1} parent=15 // pred_check_branch
          %163 = sbr.rel (%p161) target = $region20
        $region19: #{tpu_custom_call.1} parent=15 // pred_region
          %s164 = sand.u32 %s46, 1
          %s165 = scalar_lea.sflag [#allocation3], %s164
          %s166 = sand.u32 %s46, 1
          %s167 = smul.addr %s166, 128
          %s168 = scalar_lea.vmem [#allocation2], %s167
          %s169 = smul.u32 4, %s30
          %s171 = ssub.s32 2048, 2048
          %172 = vsyncadd %s165, %s171
          %s173 = smul.addr %s29, 16
          %s174 = sadd.s32 %s169, %s173
          %s175 = smul.addr %s174, 128
          %s176 = scalar_lea.hbm %s0, %s175
          %s177 = sshll.u32 %s168, 4
          %s178 = int_to_ptr.vmem [resolvable:$true] %s177
          %183 = dma.hbm_to_vmem [thread:$0]  %s176, 2048, %s178, %s165, 128, 128, 8
        $region20: #{tpu_custom_call.1} parent=15 // pred_fallthru
          _
        // Predicated region
        $region21: #{tpu_custom_call.1} parent=15 // pred_check
          %p184 = pneg %p84
        $region22: #{tpu_custom_call.1} parent=15 // pred_check_branch
          %186 = sbr.rel (%p184) target = $region24
        $region23: #{tpu_custom_call.1} parent=15 // pred_region
          %s187 = sand.u32 %s74, 1
          %s188 = scalar_lea.sflag [#allocation6], %s187
          %s189 = sand.u32 %s74, 1
          %s190 = smul.addr %s189, 32
          %s191 = scalar_lea.vmem [#allocation5], %s190
          %s192 = smul.u32 4, %s30
          %s194 = ssub.s32 512, 512
          %195 = vsyncadd %s188, %s194
          %s196 = smul.addr %s29, 4
          %s197 = sadd.s32 %s192, %s196
          %s198 = smul.addr %s197, 128
          %s199 = scalar_lea.hbm %s1, %s198
          %s200 = sshll.u32 %s191, 4
          %s201 = int_to_ptr.vmem [resolvable:$true] %s200
          %206 = dma.hbm_to_vmem [thread:$0]  %s199, 512, %s201, %s188, 128, 128, 8
        $region24: #{tpu_custom_call.1} parent=15 // pred_fallthru
          _
      $region16: #{tpu_custom_call.1} parent=5 // pred_fallthru
        _
      %p207 = scmp.le.s32.totalorder 1, %s22
      %p208 = scmp.lt.s32.totalorder %s22, 3
      %p209 = pnand %p207, %p208
      %p210 = pneg %p209
      // Predicated region
      $region25: #{tpu_custom_call.1} parent=5 // pred_check
        _
      $region26: #{tpu_custom_call.1} parent=5 // pred_check_branch
        %212 = sbr.rel (%p209) target = $region28
      $region27: #{tpu_custom_call.1} parent=5 // pred_region
        %s213 = ssub.s32 %s22, 1
        %s214 = sand.u32 %s49, 1
        %s215 = scalar_lea.sflag [#allocation3], %s214
        %s216 = sand.u32 %s49, 1
        %s217 = smul.addr %s216, 128
        %s218 = scalar_lea.vmem [#allocation2], %s217
        // Predicated region
        $region29: #{tpu_custom_call.1} parent=27 // pred_check
          %p219 = pneg %p62
        $region30: #{tpu_custom_call.1} parent=27 // pred_check_branch
          %221 = sbr.rel (%p219) target = $region32
        $region31: #{tpu_custom_call.1} parent=27 // pred_region
          %222 = dma.done %s215, 2048
        $region32: #{tpu_custom_call.1} parent=27 // pred_fallthru
          _
        %s223 = sand.u32 %s77, 1
        %s224 = scalar_lea.sflag [#allocation6], %s223
        %s225 = sand.u32 %s77, 1
        %s226 = smul.addr %s225, 32
        %s227 = scalar_lea.vmem [#allocation5], %s226
        // Predicated region
        $region33: #{tpu_custom_call.1} parent=27 // pred_check
          %p228 = pneg %p90
        $region34: #{tpu_custom_call.1} parent=27 // pred_check_branch
          %230 = sbr.rel (%p228) target = $region36
        $region35: #{tpu_custom_call.1} parent=27 // pred_region
          %231 = dma.done %s224, 512
        $region36: #{tpu_custom_call.1} parent=27 // pred_fallthru
          _
        %s232 = sand.u32 %s49, 1
        %s233 = scalar_lea.sflag [#allocation3], %s232
        %s234 = sand.u32 %s49, 1
        %s235 = smul.addr %s234, 128
        %s236 = scalar_lea.vmem [#allocation2], %s235
        %p237 = pneg %p62
        %p238 = pneg %p59
        %s239 = sand.u32 %s77, 1
        %s240 = scalar_lea.sflag [#allocation6], %s239
        %s241 = sand.u32 %s77, 1
        %s242 = smul.addr %s241, 32
        %s243 = scalar_lea.vmem [#allocation5], %s242
        %p244 = pneg %p90
        %p245 = pneg %p87
        %p246 = pneg %p116
        %p247 = pneg %p113
        %s248 = sand.u32 %s103, 1
        %s249 = scalar_lea.sflag [#allocation4], %s248
        %s250 = sand.u32 %s103, 1
        %s251 = smul.addr %s250, 4
        %s252 = scalar_lea.vmem [#allocation7], %s251
        %p253 = pneg %p142
        %p254 = pneg %p139
        %s255 = sand.u32 %s129, 1
        %s256 = scalar_lea.sflag [#allocation9], %s255
        %s257 = sand.u32 %s129, 1
        %s258 = smul.addr %s257, 4
        %s259 = scalar_lea.vmem [#allocation8], %s258
        %s260 = smul.u32 4, %s32
        %s261 = smul.u32 4, %s32
        %p262 = scmp.eq.s32.totalorder %s32, 0
        // Predicated region
        $region37: #{tpu_custom_call.1} parent=27 // pred_check
          %p263 = pneg %p262
        $region38: #{tpu_custom_call.1} parent=27 // pred_check_branch
          %265 = sbr.rel (%p263) target = $region40
        $region39: #{tpu_custom_call.1} parent=27 // pred_region
          %266 = vst [vmem:[%s252] sm:$0xf] 0.0
          %267 = vst [vmem:[%s259] sm:$0xf] 0.0
        $region40: #{tpu_custom_call.1} parent=27 // pred_fallthru
          _
        %v268 = vld [vmem:[%s218] sm:$0xff]
        %v269 = vld [vmem:[%s218 + $0x8] sm:$0xff]
        %v270 = vld [vmem:[%s218 + $0x10] sm:$0xff]
        %v271 = vld [vmem:[%s218 + $0x18] sm:$0xff]
        %v272 = vld [vmem:[%s218 + $0x20] sm:$0xff]
        %v273 = vld [vmem:[%s218 + $0x28] sm:$0xff]
        %v274 = vld [vmem:[%s218 + $0x30] sm:$0xff]
        %v275 = vld [vmem:[%s218 + $0x38] sm:$0xff]
        %v276 = vld [vmem:[%s218 + $0x40] sm:$0xff]
        %v277 = vld [vmem:[%s218 + $0x48] sm:$0xff]
        %v278 = vld [vmem:[%s218 + $0x50] sm:$0xff]
        %v279 = vld [vmem:[%s218 + $0x58] sm:$0xff]
        %v280 = vld [vmem:[%s218 + $0x60] sm:$0xff]
        %v281 = vld [vmem:[%s218 + $0x68] sm:$0xff]
        %v282 = vld [vmem:[%s218 + $0x70] sm:$0xff]
        %v283 = vld [vmem:[%s218 + $0x78] sm:$0xff]
        %v284 = vld [vmem:[%s227] sm:$0xff]
        %v285 = vld [vmem:[%s227 + $0x8] sm:$0xff]
        %v286 = vld [vmem:[%s227 + $0x10] sm:$0xff]
        %v287 = vld [vmem:[%s227 + $0x18] sm:$0xff]
        %v288 = vmax.f32 %v268, %v272
        %v289 = vmax.f32 %v288, %v276
        %v290 = vmax.f32 %v289, %v280
        %v291 = vmax.f32 %v269, %v273
        %v292 = vmax.f32 %v291, %v277
        %v293 = vmax.f32 %v292, %v281
        %v294 = vmax.f32 %v270, %v274
        %v295 = vmax.f32 %v294, %v278
        %v296 = vmax.f32 %v295, %v282
        %v297 = vmax.f32 %v271, %v275
        %v298 = vmax.f32 %v297, %v279
        %v299 = vmax.f32 %v298, %v283
        %v300 = vsub.f32 %v268, %v290
        %v301 = vsub.f32 %v269, %v293
        %v302 = vsub.f32 %v270, %v296
        %v303 = vsub.f32 %v271, %v299
        %v304 = vsub.f32 %v272, %v290
        %v305 = vsub.f32 %v273, %v293
        %v306 = vsub.f32 %v274, %v296
        %v307 = vsub.f32 %v275, %v299
        %v308 = vsub.f32 %v276, %v290
        %v309 = vsub.f32 %v277, %v293
        %v310 = vsub.f32 %v278, %v296
        %v311 = vsub.f32 %v279, %v299
        %v312 = vsub.f32 %v280, %v290
        %v313 = vsub.f32 %v281, %v293
        %v314 = vsub.f32 %v282, %v296
        %v315 = vsub.f32 %v283, %v299
        %v316 = vmul.f32 %v300, 1.442695
        %v317 = vpow.pop %v316
        %v318 = vmul.f32 %v301, 1.442695
        %v319 = vpow.pop %v318
        %v320 = vmul.f32 %v302, 1.442695
        %v321 = vpow.pop %v320
        %v322 = vmul.f32 %v303, 1.442695
        %v323 = vpow.pop %v322
        %v324 = vmul.f32 %v304, 1.442695
        %v325 = vpow.pop %v324
        %v326 = vmul.f32 %v305, 1.442695
        %v327 = vpow.pop %v326
        %v328 = vmul.f32 %v306, 1.442695
        %v329 = vpow.pop %v328
        %v330 = vmul.f32 %v307, 1.442695
        %v331 = vpow.pop %v330
        %v332 = vmul.f32 %v308, 1.442695
        %v333 = vpow.pop %v332
        %v334 = vmul.f32 %v309, 1.442695
        %v335 = vpow.pop %v334
        %v336 = vmul.f32 %v310, 1.442695
        %v337 = vpow.pop %v336
        %v338 = vmul.f32 %v311, 1.442695
        %v339 = vpow.pop %v338
        %v340 = vmul.f32 %v312, 1.442695
        %v341 = vpow.pop %v340
        %v342 = vmul.f32 %v313, 1.442695
        %v343 = vpow.pop %v342
        %v344 = vmul.f32 %v314, 1.442695
        %v345 = vpow.pop %v344
        %v346 = vmul.f32 %v315, 1.442695
        %v347 = vpow.pop %v346
        %v348 = vadd.f32 %v317, %v325
        %v349 = vadd.f32 %v348, %v333
        %v350 = vadd.f32 %v349, %v341
        %v351 = vadd.f32 %v319, %v327
        %v352 = vadd.f32 %v351, %v335
        %v353 = vadd.f32 %v352, %v343
        %v354 = vadd.f32 %v321, %v329
        %v355 = vadd.f32 %v354, %v337
        %v356 = vadd.f32 %v355, %v345
        %v357 = vadd.f32 %v323, %v331
        %v358 = vadd.f32 %v357, %v339
        %v359 = vadd.f32 %v358, %v347
        %v360 = vrcp.pop %v350
        %v361 = vmul.f32 1.0, %v360
        %v362 = vrcp.pop %v353
        %v363 = vmul.f32 1.0, %v362
        %v364 = vrcp.pop %v356
        %v365 = vmul.f32 1.0, %v364
        %v366 = vrcp.pop %v359
        %v367 = vmul.f32 1.0, %v366
        %v368 = vmul.f32 %v317, %v361
        %v369 = vmul.f32 %v319, %v363
        %v370 = vmul.f32 %v321, %v365
        %v371 = vmul.f32 %v323, %v367
        %v372 = vmul.f32 %v325, %v361
        %v373 = vmul.f32 %v327, %v363
        %v374 = vmul.f32 %v329, %v365
        %v375 = vmul.f32 %v331, %v367
        %v376 = vmul.f32 %v333, %v361
        %v377 = vmul.f32 %v335, %v363
        %v378 = vmul.f32 %v337, %v365
        %v379 = vmul.f32 %v339, %v367
        %v380 = vmul.f32 %v341, %v361
        %v381 = vmul.f32 %v343, %v363
        %v382 = vmul.f32 %v345, %v365
        %v383 = vmul.f32 %v347, %v367
        %vm384 = vcmp.eq.s32.totalorder %v284, 0
        %vm385 = vcmp.eq.s32.totalorder %v285, 0
        %vm386 = vcmp.eq.s32.totalorder %v286, 0
        %vm387 = vcmp.eq.s32.totalorder %v287, 0
        %vm388 = vcmp.eq.s32.totalorder %v284, 1
        %vm389 = vcmp.eq.s32.totalorder %v285, 1
        %vm390 = vcmp.eq.s32.totalorder %v286, 1
        %vm391 = vcmp.eq.s32.totalorder %v287, 1
        %vm392 = vcmp.eq.s32.totalorder %v284, 2
        %vm393 = vcmp.eq.s32.totalorder %v285, 2
        %vm394 = vcmp.eq.s32.totalorder %v286, 2
        %vm395 = vcmp.eq.s32.totalorder %v287, 2
        %vm396 = vcmp.eq.s32.totalorder %v284, 3
        %vm397 = vcmp.eq.s32.totalorder %v285, 3
        %vm398 = vcmp.eq.s32.totalorder %v286, 3
        %vm399 = vcmp.eq.s32.totalorder %v287, 3
        %v400 = vsel %vm384, 1, 0
        %v401 = vsel %vm385, 1, 0
        %v402 = vsel %vm386, 1, 0
        %v403 = vsel %vm387, 1, 0
        %v404 = vsel %vm388, 1, 0
        %v405 = vsel %vm389, 1, 0
        %v406 = vsel %vm390, 1, 0
        %v407 = vsel %vm391, 1, 0
        %v408 = vsel %vm392, 1, 0
        %v409 = vsel %vm393, 1, 0
        %v410 = vsel %vm394, 1, 0
        %v411 = vsel %vm395, 1, 0
        %v412 = vsel %vm396, 1, 0
        %v413 = vsel %vm397, 1, 0
        %v414 = vsel %vm398, 1, 0
        %v415 = vsel %vm399, 1, 0
        %v416 = vcvt.s32.f32 %v400
        %v417 = vcvt.s32.f32 %v401
        %v418 = vcvt.s32.f32 %v402
        %v419 = vcvt.s32.f32 %v403
        %v420 = vcvt.s32.f32 %v404
        %v421 = vcvt.s32.f32 %v405
        %v422 = vcvt.s32.f32 %v406
        %v423 = vcvt.s32.f32 %v407
        %v424 = vcvt.s32.f32 %v408
        %v425 = vcvt.s32.f32 %v409
        %v426 = vcvt.s32.f32 %v410
        %v427 = vcvt.s32.f32 %v411
        %v428 = vcvt.s32.f32 %v412
        %v429 = vcvt.s32.f32 %v413
        %v430 = vcvt.s32.f32 %v414
        %v431 = vcvt.s32.f32 %v415
        %v432 = vmul.f32 %v368, %v416
        %v433 = vmul.f32 %v369, %v417
        %v434 = vmul.f32 %v370, %v418
        %v435 = vmul.f32 %v371, %v419
        %v436 = vmul.f32 %v372, %v420
        %v437 = vmul.f32 %v373, %v421
        %v438 = vmul.f32 %v374, %v422
        %v439 = vmul.f32 %v375, %v423
        %v440 = vmul.f32 %v376, %v424
        %v441 = vmul.f32 %v377, %v425
        %v442 = vmul.f32 %v378, %v426
        %v443 = vmul.f32 %v379, %v427
        %v444 = vmul.f32 %v380, %v428
        %v445 = vmul.f32 %v381, %v429
        %v446 = vmul.f32 %v382, %v430
        %v447 = vmul.f32 %v383, %v431
        %v448 = vadd.f32 %v432, %v433
        %v449 = vadd.f32 %v448, %v434
        %v450 = vadd.f32 %v449, %v435
        %v451 = vrot.slane %v450, 4
        %v452 = vadd.f32 %v450, %v451
        %v453 = vrot.slane %v452, 2
        %v454 = vadd.f32 %v452, %v453
        %v455 = vrot.slane %v454, 1
        %v456 = vadd.f32 %v454, %v455
        %v457 = vadd.f32 %v436, %v437
        %v458 = vadd.f32 %v457, %v438
        %v459 = vadd.f32 %v458, %v439
        %v460 = vrot.slane %v459, 4
        %v461 = vadd.f32 %v459, %v460
        %v462 = vrot.slane %v461, 2
        %v463 = vadd.f32 %v461, %v462
        %v464 = vrot.slane %v463, 1
        %v465 = vadd.f32 %v463, %v464
        %v466 = vadd.f32 %v440, %v441
        %v467 = vadd.f32 %v466, %v442
        %v468 = vadd.f32 %v467, %v443
        %v469 = vrot.slane %v468, 4
        %v470 = vadd.f32 %v468, %v469
        %v471 = vrot.slane %v470, 2
        %v472 = vadd.f32 %v470, %v471
        %v473 = vrot.slane %v472, 1
        %v474 = vadd.f32 %v472, %v473
        %v475 = vadd.f32 %v444, %v445
        %v476 = vadd.f32 %v475, %v446
        %v477 = vadd.f32 %v476, %v447
        %v478 = vrot.slane %v477, 4
        %v479 = vadd.f32 %v477, %v478
        %v480 = vrot.slane %v479, 2
        %v481 = vadd.f32 %v479, %v480
        %v482 = vrot.slane %v481, 1
        %v483 = vadd.f32 %v481, %v482
        %v484 = vadd.f32 %v368, %v369
        %v485 = vadd.f32 %v484, %v370
        %v486 = vadd.f32 %v485, %v371
        %v487 = vrot.slane %v486, 4
        %v488 = vadd.f32 %v486, %v487
        %v489 = vrot.slane %v488, 2
        %v490 = vadd.f32 %v488, %v489
        %v491 = vrot.slane %v490, 1
        %v492 = vadd.f32 %v490, %v491
        %v493 = vadd.f32 %v372, %v373
        %v494 = vadd.f32 %v493, %v374
        %v495 = vadd.f32 %v494, %v375
        %v496 = vrot.slane %v495, 4
        %v497 = vadd.f32 %v495, %v496
        %v498 = vrot.slane %v497, 2
        %v499 = vadd.f32 %v497, %v498
        %v500 = vrot.slane %v499, 1
        %v501 = vadd.f32 %v499, %v500
        %v502 = vadd.f32 %v376, %v377
        %v503 = vadd.f32 %v502, %v378
        %v504 = vadd.f32 %v503, %v379
        %v505 = vrot.slane %v504, 4
        %v506 = vadd.f32 %v504, %v505
        %v507 = vrot.slane %v506, 2
        %v508 = vadd.f32 %v506, %v507
        %v509 = vrot.slane %v508, 1
        %v510 = vadd.f32 %v508, %v509
        %v511 = vadd.f32 %v380, %v381
        %v512 = vadd.f32 %v511, %v382
        %v513 = vadd.f32 %v512, %v383
        %v514 = vrot.slane %v513, 4
        %v515 = vadd.f32 %v513, %v514
        %v516 = vrot.slane %v515, 2
        %v517 = vadd.f32 %v515, %v516
        %v518 = vrot.slane %v517, 1
        %v519 = vadd.f32 %v517, %v518
        %v520 = vadd.f32 %v416, %v417
        %v521 = vadd.f32 %v520, %v418
        %v522 = vadd.f32 %v521, %v419
        %v523 = vrot.slane %v522, 4
        %v524 = vadd.f32 %v522, %v523
        %v525 = vrot.slane %v524, 2
        %v526 = vadd.f32 %v524, %v525
        %v527 = vrot.slane %v526, 1
        %v528 = vadd.f32 %v526, %v527
        %v529 = vadd.f32 %v420, %v421
        %v530 = vadd.f32 %v529, %v422
        %v531 = vadd.f32 %v530, %v423
        %v532 = vrot.slane %v531, 4
        %v533 = vadd.f32 %v531, %v532
        %v534 = vrot.slane %v533, 2
        %v535 = vadd.f32 %v533, %v534
        %v536 = vrot.slane %v535, 1
        %v537 = vadd.f32 %v535, %v536
        %v538 = vadd.f32 %v424, %v425
        %v539 = vadd.f32 %v538, %v426
        %v540 = vadd.f32 %v539, %v427
        %v541 = vrot.slane %v540, 4
        %v542 = vadd.f32 %v540, %v541
        %v543 = vrot.slane %v542, 2
        %v544 = vadd.f32 %v542, %v543
        %v545 = vrot.slane %v544, 1
        %v546 = vadd.f32 %v544, %v545
        %v547 = vadd.f32 %v428, %v429
        %v548 = vadd.f32 %v547, %v430
        %v549 = vadd.f32 %v548, %v431
        %v550 = vrot.slane %v549, 4
        %v551 = vadd.f32 %v549, %v550
        %v552 = vrot.slane %v551, 2
        %v553 = vadd.f32 %v551, %v552
        %v554 = vrot.slane %v553, 1
        %v555 = vadd.f32 %v553, %v554
        %v556 = vadd.f32 %v492, %v528
        %v557 = vadd.f32 %v501, %v537
        %v558 = vadd.f32 %v510, %v546
        %v559 = vadd.f32 %v519, %v555
        %v560 = vld [vmem:[%s252] sm:$0xf]
        %vm565 = vcmask 1041409
        %v566 = vsel %vm565, %v465, %v456
        %vm567 = vcmask 1042434
        %v568 = vsel %vm567, %v474, %v566
        %vm569 = vcmask 1043459
        %v570 = vsel %vm569, %v483, %v568
        %v572 = vadd.f32 %v560, %v570
        %573 = vst [vmem:[%s252] sm:$0xf] %v572
        %v574 = vld [vmem:[%s259] sm:$0xf]
        %v579 = vsel %vm565, %v557, %v556
        %v580 = vsel %vm567, %v558, %v579
        %v581 = vsel %vm569, %v559, %v580
        %v583 = vadd.f32 %v574, %v581
        %584 = vst [vmem:[%s259] sm:$0xf] %v583
        %s585 = sand.u32 %s103, 1
        %s586 = scalar_lea.sflag [#allocation4], %s585
        %s587 = sand.u32 %s103, 1
        %s588 = smul.addr %s587, 4
        %s589 = scalar_lea.vmem [#allocation7], %s588
        %s590 = sand.u32 %s129, 1
        %s591 = scalar_lea.sflag [#allocation9], %s590
        %s592 = sand.u32 %s129, 1
        %s593 = smul.addr %s592, 4
        %s594 = scalar_lea.vmem [#allocation8], %s593
        // Predicated region
        $region41: #{tpu_custom_call.1} parent=27 // pred_check
          %p595 = pneg %p113
        $region42: #{tpu_custom_call.1} parent=27 // pred_check_branch
          %597 = sbr.rel (%p595) target = $region44
        $region43: #{tpu_custom_call.1} parent=27 // pred_region
          %s599 = ssub.s32 64, 64
          %600 = vsyncadd %s586, %s599
          %s601 = smul.addr %s31, 64
          %s602 = scalar_lea.hbm %s2, %s601
          %s604 = sshll.u32 %s589, 4
          %s605 = int_to_ptr.vmem [resolvable:$true] %s604
          %607 = dma.vmem_to_hbm [thread:$0]  %s605, 64, %s602, %s586
        $region44: #{tpu_custom_call.1} parent=27 // pred_fallthru
          _
        // Predicated region
        $region45: #{tpu_custom_call.1} parent=27 // pred_check
          %p608 = pneg %p139
        $region46: #{tpu_custom_call.1} parent=27 // pred_check_branch
          %610 = sbr.rel (%p608) target = $region48
        $region47: #{tpu_custom_call.1} parent=27 // pred_region
          %s612 = ssub.s32 64, 64
          %613 = vsyncadd %s591, %s612
          %s614 = smul.addr %s31, 64
          %s615 = scalar_lea.hbm %s3, %s614
          %s617 = sshll.u32 %s594, 4
          %s618 = int_to_ptr.vmem [resolvable:$true] %s617
          %620 = dma.vmem_to_hbm [thread:$0]  %s618, 64, %s615, %s591
        $region48: #{tpu_custom_call.1} parent=27 // pred_fallthru
          _
      $region28: #{tpu_custom_call.1} parent=5 // pred_fallthru
        _
      %p621 = scmp.le.s32.totalorder 2, %s22
      // Predicated region
      $region49: #{tpu_custom_call.1} parent=5 // pred_check
        %p622 = pneg %p621
      $region50: #{tpu_custom_call.1} parent=5 // pred_check_branch
        %624 = sbr.rel (%p622) target = $region52
      $region51: #{tpu_custom_call.1} parent=5 // pred_region
        %s625 = ssub.s32 %s22, 2
        // Predicated region
        $region53: #{tpu_custom_call.1} parent=51 // pred_check
          %p626 = pneg %p119
        $region54: #{tpu_custom_call.1} parent=51 // pred_check_branch
          %628 = sbr.rel (%p626) target = $region56
        $region55: #{tpu_custom_call.1} parent=51 // pred_region
          %s629 = sand.u32 %s104, 1
          %s630 = scalar_lea.sflag [#allocation4], %s629
          %s631 = sand.u32 %s104, 1
          %s632 = smul.addr %s631, 4
          %s633 = scalar_lea.vmem [#allocation7], %s632
          %634 = dma.done %s630, 64
        $region56: #{tpu_custom_call.1} parent=51 // pred_fallthru
          _
        // Predicated region
        $region57: #{tpu_custom_call.1} parent=51 // pred_check
          %p635 = pneg %p145
        $region58: #{tpu_custom_call.1} parent=51 // pred_check_branch
          %637 = sbr.rel (%p635) target = $region60
        $region59: #{tpu_custom_call.1} parent=51 // pred_region
          %s638 = sand.u32 %s130, 1
          %s639 = scalar_lea.sflag [#allocation9], %s638
          %s640 = sand.u32 %s130, 1
          %s641 = smul.addr %s640, 4
          %s642 = scalar_lea.vmem [#allocation8], %s641
          %643 = dma.done %s639, 64
        $region60: #{tpu_custom_call.1} parent=51 // pred_fallthru
          _
      $region52: #{tpu_custom_call.1} parent=5 // pred_fallthru
        _
    $region6: #{tpu_custom_call.1} parent=1 // loop_footer
      %s26 = sadd.s32 1, %s22
    $region7: #{tpu_custom_call.1} parent=1 // loop_footer_branch
      %21 = sbr.rel target = $region3
    $region8: #{tpu_custom_call.1} parent=1 // loop_exit
      _
    %644 = vsyncpa [#allocation3], 1
    %s645 = scalar_lea.sflag [#allocation3], 1
    %646 = vsyncpa %s645, 1
    %647 = vsyncpa [#allocation6], 1
    %s648 = scalar_lea.sflag [#allocation6], 1
    %649 = vsyncpa %s648, 1
    %650 = vsyncpa [#allocation4], 1
    %s651 = scalar_lea.sflag [#allocation4], 1
    %652 = vsyncpa %s651, 1
    %653 = vsyncpa [#allocation9], 1
    %s654 = scalar_lea.sflag [#allocation9], 1
    %655 = vsyncpa %s654, 1

</llo_original>
